<compile_context>
chip_gen: v7x
topology: tpu7x:2x2x1
jax: 0.10.0
libtpu: 0.0.40
codegen_flags: <defaults>
</compile_context>

<pallas_src>
import functools

import jax
import jax.numpy as jnp
from jax import lax
from jax.experimental import pallas as pl
from jax.experimental.pallas import tpu as pltpu


def _round_up(x: int, m: int) -> int:
    return (x + m - 1) // m * m


# ---------------------------------------------------------------------------
# Fused kernel: one (batch, q-tile) per grid step.
#   * at q-tile 0 of each batch: project K and V into VMEM scratch
#   * every step: project the q tile, compute scores, softmax, context
# ---------------------------------------------------------------------------
def _head_kernel(q_ref, k_ref, v_ref, wq_ref, wk_ref, wv_ref,
                 ctx_ref, attn_ref, kp_ref, vp_ref, *, cdt):
    # Project K/V once per batch (scratch persists across the inner q axis).
    @pl.when(pl.program_id(1) == 0)
    def _():
        kp_ref[...] = lax.dot_general(
            k_ref[...].astype(cdt), wk_ref[...],
            dimension_numbers=(((1,), (1,)), ((), ())),
            preferred_element_type=jnp.float32).astype(kp_ref.dtype)
        vp_ref[...] = lax.dot_general(
            v_ref[...].astype(cdt), wv_ref[...],
            dimension_numbers=(((1,), (1,)), ((), ())),
            preferred_element_type=jnp.float32).astype(vp_ref.dtype)

    # Project the q tile (Wq already carries the 1/d attention scale).
    qp = lax.dot_general(
        q_ref[...].astype(cdt), wq_ref[...],
        dimension_numbers=(((1,), (1,)), ((), ())),
        preferred_element_type=jnp.float32)                  # (tq, D) f32

    # scores = qp @ kp.T without an explicit transpose.
    scores = lax.dot_general(
        qp.astype(cdt), kp_ref[...],
        dimension_numbers=(((1,), (1,)), ((), ())),
        preferred_element_type=jnp.float32)                  # (tq, Tk) f32

    # Softmax in f32; exact normalization so rows sum to 1.
    m = jnp.max(scores, axis=-1, keepdims=True)
    e = jnp.exp(scores - m)
    s = jnp.sum(e, axis=-1, keepdims=True)
    p = e / s

    attn_ref[...] = p.astype(attn_ref.dtype)
    ctx_ref[...] = jnp.dot(p.astype(vp_ref.dtype), vp_ref[...],
                           preferred_element_type=jnp.float32
                           ).astype(ctx_ref.dtype)


# ---------------------------------------------------------------------------
# Wrapper
# ---------------------------------------------------------------------------
def head_forward(query, key, value, w_q, w_k, w_v, *,
                 compute_dtype=jnp.bfloat16, attn_dtype=None, q_tile=256):
    """query/key/value: (B, T, D); w_*: (D, D) nn.Linear weights (y = x @ W.T).

    compute_dtype: dtype of the MXU matmul operands (accumulation is f32).
    attn_dtype:    dtype of the returned attention matrix (default: query.dtype).
    """
    # TODO(synk): optional `mask` argument not plumbed through (forward called with mask=None).
    B, Tq, D = query.shape
    Tk = key.shape[1]
    out_dtype = query.dtype
    cdt = out_dtype if compute_dtype is None else jnp.dtype(compute_dtype)
    adt = out_dtype if attn_dtype is None else jnp.dtype(attn_dtype)

    # Fold the attention scale (1/d) into Wq once — zero in-kernel cost.
    wq = (w_q.astype(jnp.float32) * (1.0 / D)).astype(cdt)
    wk = w_k.astype(cdt)
    wv = w_v.astype(cdt)

    b_in = jnp.dtype(query.dtype).itemsize
    b_cdt = jnp.dtype(cdt).itemsize
    b_out = jnp.dtype(out_dtype).itemsize
    b_attn = jnp.dtype(adt).itemsize

    # Per-step VMEM estimate: pipelined blocks (double-buffered), K/V
    # projection scratch, and the f32 softmax temporaries (scores/e/p) + qp.
    def est(tq):
        return (2 * tq * D * b_in                 # q tile (in)
                + 2 * 2 * Tk * D * b_in           # k, v (in; change only per b)
                + 2 * 3 * D * D * b_cdt           # weights
                + 2 * tq * D * b_out              # ctx (out)
                + 2 * tq * Tk * b_attn            # attn (out)
                + 2 * Tk * D * b_cdt              # kproj/vproj scratch
                + 4 * tq * Tk * 4                 # scores, e, p (+slack) f32
                + 2 * tq * D * 4)                 # qp f32 (+slack)

    q_tile = max(8, (q_tile // 8) * 8)
    budget = 44 * 1024 * 1024                     # safe on v7x (64 MiB VMEM)
    if Tq <= q_tile:
        tq = Tq                                   # full-extent block, no padding
    else:
        tq = q_tile
        while tq > 8 and est(tq) > budget:
            tq = max(8, tq // 2)
    Tq_pad = Tq if Tq <= q_tile else _round_up(Tq, tq)
    n_q = Tq_pad // tq

    q_in = query
    if Tq_pad != Tq:                              # only when Tq > q_tile and ragged
        q_in = jnp.pad(query, ((0, 0), (0, Tq_pad - Tq), (0, 0)))

    vmem_limit = int(min(52 * 1024 * 1024,
                         max(32 * 1024 * 1024, est(tq) + (4 << 20))))

    kernel = functools.partial(_head_kernel, cdt=cdt)

    ctx, attn = pl.pallas_call(
        kernel,
        out_shape=(jax.ShapeDtypeStruct((B, Tq_pad, D), out_dtype),
                   jax.ShapeDtypeStruct((B, Tq_pad, Tk), adt)),
        grid_spec=pltpu.PrefetchScalarGridSpec(
            num_scalar_prefetch=0,
            grid=(B, n_q),
            in_specs=[
                pl.BlockSpec((pl.Squeezed(), tq, D), lambda b, i: (b, i, 0)),
                pl.BlockSpec((pl.Squeezed(), Tk, D), lambda b, i: (b, 0, 0)),
                pl.BlockSpec((pl.Squeezed(), Tk, D), lambda b, i: (b, 0, 0)),
                pl.BlockSpec((D, D), lambda b, i: (0, 0)),
                pl.BlockSpec((D, D), lambda b, i: (0, 0)),
                pl.BlockSpec((D, D), lambda b, i: (0, 0)),
            ],
            out_specs=[
                pl.BlockSpec((pl.Squeezed(), tq, D), lambda b, i: (b, i, 0)),
                pl.BlockSpec((pl.Squeezed(), tq, Tk), lambda b, i: (b, i, 0)),
            ],
            scratch_shapes=[
                pltpu.VMEM((Tk, D), cdt),          # projected K (per batch)
                pltpu.VMEM((Tk, D), cdt),          # projected V (per batch)
            ],
        ),
        compiler_params=pltpu.CompilerParams(
            # batch axis parallel (megacore); q-tile axis carries the K/V
            # scratch, so it must be "arbitrary".
            dimension_semantics=("parallel", "arbitrary"),
            vmem_limit_bytes=vmem_limit),
    )(q_in, key, value, wq, wk, wv)

    if Tq_pad != Tq:
        ctx = ctx[:, :Tq, :]
        attn = attn[:, :Tq, :]
    return ctx, attn


# ---------------------------------------------------------------------------
# Pure-JAX reference
# ---------------------------------------------------------------------------
def _reference(query, key, value, w_q, w_k, w_v):
    qp = query @ w_q.T
    kp = key @ w_k.T
    vp = value @ w_v.T
    scores = jnp.einsum("bqd,bkd->bqk", qp, kp) * (1.0 / query.shape[-1])
    p = jax.nn.softmax(scores, axis=-1)
    return jnp.einsum("bqk,bkd->bqd", p, vp), p


if __name__ == "__main__":
    B, Tq, Tk, D = 2, 8, 8, 32
    key0 = jax.random.PRNGKey(0)
    k1, k2, k3, k4, k5, k6 = jax.random.split(key0, 6)

    query = jax.random.normal(k1, (B, Tq, D), dtype=jnp.float32)
    keyx = jax.random.normal(k2, (B, Tk, D), dtype=jnp.float32)
    value = jax.random.normal(k3, (B, Tk, D), dtype=jnp.float32)

    # Deterministic nn.Linear weights, shape (d, d), no bias.
    w_q = jax.random.normal(k4, (D, D), dtype=jnp.float32) / jnp.sqrt(D)
    w_k = jax.random.normal(k5, (D, D), dtype=jnp.float32) / jnp.sqrt(D)
    w_v = jax.random.normal(k6, (D, D), dtype=jnp.float32) / jnp.sqrt(D)

    ctx_ref, attn_ref = _reference(query, keyx, value, w_q, w_k, w_v)

    # f32-operand path (tight tolerance).
    ctx32, attn32 = head_forward(query, keyx, value, w_q, w_k, w_v,
                                 compute_dtype=jnp.float32)
    jax.block_until_ready((ctx32, attn32))
    assert jnp.allclose(ctx32, ctx_ref, atol=3e-3, rtol=3e-3)
    assert jnp.allclose(attn32, attn_ref, atol=3e-3, rtol=3e-3)
    # attention rows normalize exactly
    assert jnp.allclose(jnp.sum(attn32, axis=-1), 1.0, atol=1e-5)

    # Default bf16 MXU-operand path (f32 accumulation), looser tolerance.
    ctxbf, attnbf = head_forward(query, keyx, value, w_q, w_k, w_v)
    jax.block_until_ready((ctxbf, attnbf))
    assert jnp.allclose(ctxbf, ctx_ref, atol=7e-2, rtol=7e-2)
    assert jnp.allclose(attnbf, attn_ref, atol=7e-2, rtol=7e-2)

    print("KERNEL_OK")
</pallas_src>

<mosaic_0001>
module attributes {stable_mosaic.version = 11 : i64} {
  func.func @_head_kernel(%arg0: i32, %arg1: i32, %arg2: memref<1x8x32xf32, #tpu.memory_space<vmem>>, %arg3: memref<1x8x32xf32, #tpu.memory_space<vmem>>, %arg4: memref<1x8x32xf32, #tpu.memory_space<vmem>>, %arg5: memref<32x32xf32, #tpu.memory_space<vmem>>, %arg6: memref<32x32xf32, #tpu.memory_space<vmem>>, %arg7: memref<32x32xf32, #tpu.memory_space<vmem>>, %arg8: memref<1x8x32xf32, #tpu.memory_space<vmem>>, %arg9: memref<1x8x8xf32, #tpu.memory_space<vmem>>, %arg10: memref<8x32xf32, #tpu.memory_space<vmem>>, %arg11: memref<8x32xf32, #tpu.memory_space<vmem>>) attributes {dimension_semantics = [#tpu.dimension_semantics<parallel>, #tpu.dimension_semantics<arbitrary>], iteration_bounds = array<i64: 2, 1>, scalar_prefetch = 0 : i64, scratch_operands = 2 : i64, tpu.core_type = #tpu.core_type<tc>, window_params = [{transform_indices = @transform_0, window_bounds = array<i64: 1, 8, 32>}, {transform_indices = @transform_1, window_bounds = array<i64: 1, 8, 32>}, {transform_indices = @transform_2, window_bounds = array<i64: 1, 8, 32>}, {pipeline_mode = #tpu.pipeline_mode<synchronous>, transform_indices = @transform_3, window_bounds = array<i64: 32, 32>}, {pipeline_mode = #tpu.pipeline_mode<synchronous>, transform_indices = @transform_4, window_bounds = array<i64: 32, 32>}, {pipeline_mode = #tpu.pipeline_mode<synchronous>, transform_indices = @transform_5, window_bounds = array<i64: 32, 32>}, {transform_indices = @transform_6, window_bounds = array<i64: 1, 8, 32>}, {transform_indices = @transform_7, window_bounds = array<i64: 1, 8, 8>}]} {
    %c0_i32 = arith.constant 0 : i32
    %0 = arith.cmpi eq, %arg1, %c0_i32 : i32
    %1 = arith.extui %0 : i1 to i32
    %c0_i32_0 = arith.constant 0 : i32
    %2 = arith.cmpi ne, %1, %c0_i32_0 : i32
    scf.if %2 {
      %c0_19 = arith.constant 0 : index
      %c0_20 = arith.constant 0 : index
      %c0_21 = arith.constant 0 : index
      %26 = vector.load %arg3[%c0_19, %c0_20, %c0_21] : memref<1x8x32xf32, #tpu.memory_space<vmem>>, vector<1x8x32xf32>
      %27 = vector.shape_cast %26 : vector<1x8x32xf32> to vector<8x32xf32>
      %c0_22 = arith.constant 0 : index
      %c0_23 = arith.constant 0 : index
      %28 = vector.load %arg6[%c0_22, %c0_23] : memref<32x32xf32, #tpu.memory_space<vmem>>, vector<32x32xf32>
      %cst_24 = arith.constant dense<0.000000e+00> : vector<8x32xf32>
      %29 = tpu.matmul %27, %28, %cst_24 {dimension_numbers = #tpu.dot_dimension_numbers<[1], [1], [0], [0], [0, 0, 1, 0], [], []>} : vector<8x32xf32>, vector<32x32xf32>, vector<8x32xf32> -> vector<8x32xf32>
      %c0_25 = arith.constant 0 : index
      %c0_26 = arith.constant 0 : index
      %30 = vector.load %arg10[%c0_25, %c0_26] : memref<8x32xf32, #tpu.memory_space<vmem>>, vector<8x32xf32>
      tpu.vector_store %arg10[%c0_25, %c0_26], %29 {strides = array<i32>} : memref<8x32xf32, #tpu.memory_space<vmem>>, vector<8x32xf32>,
      %c0_27 = arith.constant 0 : index
      %c0_28 = arith.constant 0 : index
      %c0_29 = arith.constant 0 : index
      %31 = vector.load %arg4[%c0_27, %c0_28, %c0_29] : memref<1x8x32xf32, #tpu.memory_space<vmem>>, vector<1x8x32xf32>
      %32 = vector.shape_cast %31 : vector<1x8x32xf32> to vector<8x32xf32>
      %c0_30 = arith.constant 0 : index
      %c0_31 = arith.constant 0 : index
      %33 = vector.load %arg7[%c0_30, %c0_31] : memref<32x32xf32, #tpu.memory_space<vmem>>, vector<32x32xf32>
      %cst_32 = arith.constant dense<0.000000e+00> : vector<8x32xf32>
      %34 = tpu.matmul %32, %33, %cst_32 {dimension_numbers = #tpu.dot_dimension_numbers<[1], [1], [0], [0], [0, 0, 1, 0], [], []>} : vector<8x32xf32>, vector<32x32xf32>, vector<8x32xf32> -> vector<8x32xf32>
      %c0_33 = arith.constant 0 : index
      %c0_34 = arith.constant 0 : index
      %35 = vector.load %arg11[%c0_33, %c0_34] : memref<8x32xf32, #tpu.memory_space<vmem>>, vector<8x32xf32>
      tpu.vector_store %arg11[%c0_33, %c0_34], %34 {strides = array<i32>} : memref<8x32xf32, #tpu.memory_space<vmem>>, vector<8x32xf32>,
    } else {
    }
    %c0 = arith.constant 0 : index
    %c0_1 = arith.constant 0 : index
    %c0_2 = arith.constant 0 : index
    %3 = vector.load %arg2[%c0, %c0_1, %c0_2] : memref<1x8x32xf32, #tpu.memory_space<vmem>>, vector<1x8x32xf32>
    %4 = vector.shape_cast %3 : vector<1x8x32xf32> to vector<8x32xf32>
    %c0_3 = arith.constant 0 : index
    %c0_4 = arith.constant 0 : index
    %5 = vector.load %arg5[%c0_3, %c0_4] : memref<32x32xf32, #tpu.memory_space<vmem>>, vector<32x32xf32>
    %cst = arith.constant dense<0.000000e+00> : vector<8x32xf32>
    %6 = tpu.matmul %4, %5, %cst {dimension_numbers = #tpu.dot_dimension_numbers<[1], [1], [0], [0], [0, 0, 1, 0], [], []>} : vector<8x32xf32>, vector<32x32xf32>, vector<8x32xf32> -> vector<8x32xf32>
    %c0_5 = arith.constant 0 : index
    %c0_6 = arith.constant 0 : index
    %7 = vector.load %arg10[%c0_5, %c0_6] : memref<8x32xf32, #tpu.memory_space<vmem>>, vector<8x32xf32>
    %cst_7 = arith.constant dense<0.000000e+00> : vector<8x8xf32>
    %8 = tpu.matmul %6, %7, %cst_7 {dimension_numbers = #tpu.dot_dimension_numbers<[1], [1], [0], [0], [0, 0, 1, 0], [], []>} : vector<8x32xf32>, vector<8x32xf32>, vector<8x8xf32> -> vector<8x8xf32>
    %cst_8 = arith.constant dense<0xFF800000> : vector<8xf32>
    %9 = vector.multi_reduction <maximumf>, %8, %cst_8 [1] : vector<8x8xf32> to vector<8xf32>
    %10 = vector.shape_cast %9 : vector<8xf32> to vector<8x1xf32>
    %11 = vector.broadcast %10 : vector<8x1xf32> to vector<8x8xf32>
    %12 = arith.subf %8, %11 : vector<8x8xf32>
    %13 = math.exp %12 : vector<8x8xf32>
    %cst_9 = arith.constant dense<0.000000e+00> : vector<8xf32>
    %14 = vector.multi_reduction <add>, %13, %cst_9 [1] : vector<8x8xf32> to vector<8xf32>
    %15 = vector.shape_cast %14 : vector<8xf32> to vector<8x1xf32>
    %16 = vector.broadcast %15 : vector<8x1xf32> to vector<8x8xf32>
    %17 = arith.divf %13, %16 : vector<8x8xf32>
    %c0_10 = arith.constant 0 : index
    %c0_11 = arith.constant 0 : index
    %c0_12 = arith.constant 0 : index
    %18 = vector.load %arg9[%c0_10, %c0_11, %c0_12] : memref<1x8x8xf32, #tpu.memory_space<vmem>>, vector<1x8x8xf32>
    %19 = vector.shape_cast %18 : vector<1x8x8xf32> to vector<8x8xf32>
    %20 = vector.shape_cast %17 : vector<8x8xf32> to vector<1x8x8xf32>
    tpu.vector_store %arg9[%c0_10, %c0_11, %c0_12], %20 {strides = array<i32>} : memref<1x8x8xf32, #tpu.memory_space<vmem>>, vector<1x8x8xf32>,
    %c0_13 = arith.constant 0 : index
    %c0_14 = arith.constant 0 : index
    %21 = vector.load %arg11[%c0_13, %c0_14] : memref<8x32xf32, #tpu.memory_space<vmem>>, vector<8x32xf32>
    %cst_15 = arith.constant dense<0.000000e+00> : vector<8x32xf32>
    %22 = tpu.matmul %17, %21, %cst_15 {dimension_numbers = #tpu.dot_dimension_numbers<[1], [0], [0], [1], [0, 0, 1, 1], [], []>} : vector<8x8xf32>, vector<8x32xf32>, vector<8x32xf32> -> vector<8x32xf32>
    %c0_16 = arith.constant 0 : index
    %c0_17 = arith.constant 0 : index
    %c0_18 = arith.constant 0 : index
    %23 = vector.load %arg8[%c0_16, %c0_17, %c0_18] : memref<1x8x32xf32, #tpu.memory_space<vmem>>, vector<1x8x32xf32>
    %24 = vector.shape_cast %23 : vector<1x8x32xf32> to vector<8x32xf32>
    %25 = vector.shape_cast %22 : vector<8x32xf32> to vector<1x8x32xf32>
    tpu.vector_store %arg8[%c0_16, %c0_17, %c0_18], %25 {strides = array<i32>} : memref<1x8x32xf32, #tpu.memory_space<vmem>>, vector<1x8x32xf32>,
    return
  }
  func.func @transform_0(%arg0: i32, %arg1: i32) -> (i32, i32, i32) {
    %c0_i32 = arith.constant 0 : i32
    %c0_i32_0 = arith.constant 0 : i32
    return %arg0, %arg1, %c0_i32 : i32, i32, i32
  }
  func.func @transform_1(%arg0: i32, %arg1: i32) -> (i32, i32, i32) {
    %c0_i32 = arith.constant 0 : i32
    %c0_i32_0 = arith.constant 0 : i32
    %c0_i32_1 = arith.constant 0 : i32
    return %arg0, %c0_i32, %c0_i32_0 : i32, i32, i32
  }
  func.func @transform_2(%arg0: i32, %arg1: i32) -> (i32, i32, i32) {
    %c0_i32 = arith.constant 0 : i32
    %c0_i32_0 = arith.constant 0 : i32
    %c0_i32_1 = arith.constant 0 : i32
    return %arg0, %c0_i32, %c0_i32_0 : i32, i32, i32
  }
  func.func @transform_3(%arg0: i32, %arg1: i32) -> (i32, i32) {
    %c0_i32 = arith.constant 0 : i32
    %c0_i32_0 = arith.constant 0 : i32
    %c0_i32_1 = arith.constant 0 : i32
    return %c0_i32, %c0_i32_0 : i32, i32
  }
  func.func @transform_4(%arg0: i32, %arg1: i32) -> (i32, i32) {
    %c0_i32 = arith.constant 0 : i32
    %c0_i32_0 = arith.constant 0 : i32
    %c0_i32_1 = arith.constant 0 : i32
    return %c0_i32, %c0_i32_0 : i32, i32
  }
  func.func @transform_5(%arg0: i32, %arg1: i32) -> (i32, i32) {
    %c0_i32 = arith.constant 0 : i32
    %c0_i32_0 = arith.constant 0 : i32
    %c0_i32_1 = arith.constant 0 : i32
    return %c0_i32, %c0_i32_0 : i32, i32
  }
  func.func @transform_6(%arg0: i32, %arg1: i32) -> (i32, i32, i32) {
    %c0_i32 = arith.constant 0 : i32
    %c0_i32_0 = arith.constant 0 : i32
    return %arg0, %arg1, %c0_i32 : i32, i32, i32
  }
  func.func @transform_7(%arg0: i32, %arg1: i32) -> (i32, i32, i32) {
    %c0_i32 = arith.constant 0 : i32
    %c0_i32_0 = arith.constant 0 : i32
    return %arg0, %arg1, %c0_i32 : i32, i32, i32
  }
}

</mosaic_0001>

<llo_original>
// kernel: tpu_custom_call.1
$region0: #{tpu_custom_call.1}
  #allocation0 [shape = 'u32[]', space=smem, size = 0x4, offset = 0x4, fixed_abs, tag = 'smem constant byte address 0x4 - core index']
  #allocation1 [shape = 'u32[144,128]{1,0:T(1,128)}', space=vmem, size = 0x12000, scoped, tag = 'internal scratch']
  #allocation2 [shape = 'f32[8,32]{1,0:T(8,128)}', space=vmem, size = 0x1000, scoped, tag = 'scratch operand']
  #allocation3 [shape = 'f32[8,32]{1,0:T(8,128)}', space=vmem, size = 0x1000, scoped, tag = 'scratch operand']
  %s0 = inlined_call_operand.hbm [shape: f32[2,8,32], index: 0, kind: input, shape index: {}]
  %s1 = inlined_call_operand.hbm [shape: f32[2,8,32], index: 1, kind: input, shape index: {}]
  %s2 = inlined_call_operand.hbm [shape: f32[2,8,32], index: 2, kind: input, shape index: {}]
  %s3 = inlined_call_operand.hbm [shape: f32[32,32], index: 3, kind: input, shape index: {}]
  %s4 = inlined_call_operand.hbm [shape: f32[32,32], index: 4, kind: input, shape index: {}]
  %s5 = inlined_call_operand.hbm [shape: f32[32,32], index: 5, kind: input, shape index: {}]
  %s6 = inlined_call_operand.hbm [shape: f32[2,8,32], index: 6, kind: output, shape index: {0}]
  %s7 = inlined_call_operand.hbm [shape: f32[2,8,8], index: 7, kind: output, shape index: {1}]
  %8 = xla_tuple %s6, %s7
  %s9 = sld [smem:[#allocation0]]
  $region93: #{tpu_custom_call.1} parent=0
    _
  %s11 = ssub.s32 1, %s9
  %s12 = scalar_select 0, %s11, %s9
  $region1: #{tpu_custom_call.1} parent=0
    #allocation4 [shape = 'u8[8192]{0}', space=vmem, size = 0x2000, scoped, tag = 'input window, operand 0']
    #allocation5 [shape = 's32[2]{0}', space=sflag, size = 0x8, scoped, tag = 'scoped memory for tpu_custom_call.1']
    #allocation6 [shape = 's32[2]{0}', space=sflag, size = 0x8, scoped, tag = 'scoped memory for tpu_custom_call.1']
    #allocation7 [shape = 'u8[8192]{0}', space=vmem, size = 0x2000, scoped, tag = 'input window, operand 1']
    #allocation8 [shape = 's32[2]{0}', space=sflag, size = 0x8, scoped, tag = 'scoped memory for tpu_custom_call.1']
    #allocation9 [shape = 'u8[8192]{0}', space=vmem, size = 0x2000, scoped, tag = 'input window, operand 2']
    #allocation10 [shape = 'u8[16384]{0}', space=vmem, size = 0x4000, scoped, tag = 'input window, operand 3, single buffered']
    #allocation11 [shape = 's32[1]{0}', space=sflag, size = 0x4, scoped, tag = 'scoped memory for tpu_custom_call.1']
    #allocation12 [shape = 'u8[16384]{0}', space=vmem, size = 0x4000, scoped, tag = 'input window, operand 4, single buffered']
    #allocation13 [shape = 'u8[16384]{0}', space=vmem, size = 0x4000, scoped, tag = 'input window, operand 5, single buffered']
    #allocation14 [shape = 's32[1]{0}', space=sflag, size = 0x4, scoped, tag = 'scoped memory for tpu_custom_call.1']
    #allocation15 [shape = 'u8[8192]{0}', space=vmem, size = 0x2000, scoped, tag = 'output window, operand 0']
    #allocation16 [shape = 'u8[8192]{0}', space=vmem, size = 0x2000, scoped, tag = 'output window, operand 1']
    #allocation17 [shape = 's32[2]{0}', space=sflag, size = 0x8, scoped, tag = 'scoped memory for tpu_custom_call.1']
    %13 = vsyncpa [#allocation5], 0
    %s14 = scalar_lea.sflag [#allocation5], 1
    %15 = vsyncpa %s14, 0
    %16 = vsyncpa [#allocation8], 0
    %s17 = scalar_lea.sflag [#allocation8], 1
    %18 = vsyncpa %s17, 0
    %19 = vsyncpa [#allocation11], 0
    %20 = vsyncpa [#allocation14], 0
    %21 = vsyncpa [#allocation6], 0
    %s22 = scalar_lea.sflag [#allocation6], 1
    %23 = vsyncpa %s22, 0
    %24 = vsyncpa [#allocation17], 0
    %s25 = scalar_lea.sflag [#allocation17], 1
    %26 = vsyncpa %s25, 0
    loop: start=0, step=1, limit=4
    $region2: #{tpu_custom_call.1} parent=1 // loop_pre_header
      _
    $region3: #{tpu_custom_call.1} parent=1 // loop_header
      %s28 = sphi 0, %s32
      %p29 = scmp.ge.s32.totalorder %s28, 4
      %s35 = sphi 0, %s47
      %s36 = sphi 0, %s43
      %s37 = sphi 0, %s35
      %s38 = sphi 0, %s36
      %s39 = sphi 0, %s37
      %s40 = sphi 0, %s38
      %s52 = sphi 0, %s54
      %s55 = sphi 0, %s52
      %s56 = sphi 0, %s55
      %s72 = sphi 0, %s56
      %s78 = sphi 0, %s80
      %s81 = sphi 0, %s78
      %s82 = sphi 0, %s81
      %s98 = sphi 0, %s82
      %s104 = sphi 0, %s106
      %s107 = sphi 0, %s104
      %s108 = sphi 0, %s107
      %s124 = sphi 0, %s108
      %s128 = sphi 0, %s128
      %s130 = sphi 0, %s128
      %s131 = sphi 0, %s130
      %s145 = sphi 0, %s131
      %s149 = sphi 0, %s149
      %s151 = sphi 0, %s149
      %s152 = sphi 0, %s151
      %s166 = sphi 0, %s152
      %s170 = sphi 0, %s170
      %s172 = sphi 0, %s170
      %s173 = sphi 0, %s172
      %s187 = sphi 0, %s173
      %s195 = sphi 0, %s197
      %s198 = sphi 0, %s195
      %s199 = sphi 0, %s198
      %s215 = sphi 0, %s199
      %s223 = sphi 0, %s225
      %s226 = sphi 0, %s223
      %s227 = sphi 0, %s226
      %s243 = sphi 0, %s227
    $region4: #{tpu_custom_call.1} parent=1 // loop_header_branch
      %31 = sbr.rel (%p29) target = $region8
    $region5: #{tpu_custom_call.1} parent=1 // loop_body
      %s33 = ssub.s32 %s28, 1
      %s34 = ssub.s32 %s28, 2
      %s41 = sadd.s32 1, %s36
      %p42 = scmp.ge.s32.totalorder %s41, 1
      %s43 = scalar_select %p42, 0, %s41
      %s44 = sadd.s32 1, %s35
      %s45 = scalar_select %p42, %s44, %s35
      %p46 = scmp.ge.s32.totalorder %s45, 2
      %s47 = scalar_select %p46, 0, %s45
      %s48 = ssub.s32 %s35, %s47
      %s49 = ssub.s32 %s36, %s43
      %s50 = sor.u32 %s48, %s49
      %p51 = scmp.eq.s32.totalorder %s50, 0
      %s53 = sadd.s32 %s52, 1
      %s54 = scalar_select %p51, %s52, %s53
      %p57 = pneg %p51
      %p58 = scmp.eq.s32.totalorder %s28, 1
      %p59 = por %p57, %p58
      %p60 = scmp.ne.s32.totalorder %s52, %s55
      %p61 = scmp.eq.s32.totalorder %s28, 0
      %p62 = por %p60, %p61
      %p63 = scmp.ne.s32.totalorder %s52, %s55
      %p64 = scmp.eq.s32.totalorder %s33, 1
      %p65 = por %p63, %p64
      %p66 = scmp.ne.s32.totalorder %s55, %s56
      %p67 = scmp.eq.s32.totalorder %s33, 0
      %p68 = por %p66, %p67
      %p69 = scmp.ne.s32.totalorder %s55, %s56
      %p70 = scmp.eq.s32.totalorder %s34, 1
      %p71 = por %p69, %p70
      %p73 = scmp.ne.s32.totalorder %s56, %s72
      %p74 = scmp.eq.s32.totalorder %s34, 0
      %p75 = por %p73, %p74
      %s76 = ssub.s32 %s35, %s47
      %p77 = scmp.eq.s32.totalorder %s76, 0
      %s79 = sadd.s32 %s78, 1
      %s80 = scalar_select %p77, %s78, %s79
      %p83 = pneg %p77
      %p84 = scmp.eq.s32.totalorder %s28, 1
      %p85 = por %p83, %p84
      %p86 = scmp.ne.s32.totalorder %s78, %s81
      %p87 = scmp.eq.s32.totalorder %s28, 0
      %p88 = por %p86, %p87
      %p89 = scmp.ne.s32.totalorder %s78, %s81
      %p90 = scmp.eq.s32.totalorder %s33, 1
      %p91 = por %p89, %p90
      %p92 = scmp.ne.s32.totalorder %s81, %s82
      %p93 = scmp.eq.s32.totalorder %s33, 0
      %p94 = por %p92, %p93
      %p95 = scmp.ne.s32.totalorder %s81, %s82
      %p96 = scmp.eq.s32.totalorder %s34, 1
      %p97 = por %p95, %p96
      %p99 = scmp.ne.s32.totalorder %s82, %s98
      %p100 = scmp.eq.s32.totalorder %s34, 0
      %p101 = por %p99, %p100
      %s102 = ssub.s32 %s35, %s47
      %p103 = scmp.eq.s32.totalorder %s102, 0
      %s105 = sadd.s32 %s104, 1
      %s106 = scalar_select %p103, %s104, %s105
      %p109 = pneg %p103
      %p110 = scmp.eq.s32.totalorder %s28, 1
      %p111 = por %p109, %p110
      %p112 = scmp.ne.s32.totalorder %s104, %s107
      %p113 = scmp.eq.s32.totalorder %s28, 0
      %p114 = por %p112, %p113
      %p115 = scmp.ne.s32.totalorder %s104, %s107
      %p116 = scmp.eq.s32.totalorder %s33, 1
      %p117 = por %p115, %p116
      %p118 = scmp.ne.s32.totalorder %s107, %s108
      %p119 = scmp.eq.s32.totalorder %s33, 0
      %p120 = por %p118, %p119
      %p121 = scmp.ne.s32.totalorder %s107, %s108
      %p122 = scmp.eq.s32.totalorder %s34, 1
      %p123 = por %p121, %p122
      %p125 = scmp.ne.s32.totalorder %s108, %s124
      %p126 = scmp.eq.s32.totalorder %s34, 0
      %p127 = por %p125, %p126
      %s129 = sadd.s32 %s128, 1
      %p132 = scmp.eq.s32.totalorder %s28, 1
      %p133 = scmp.ne.s32.totalorder %s128, %s130
      %p134 = scmp.eq.s32.totalorder %s28, 0
      %p135 = por %p133, %p134
      %p136 = scmp.ne.s32.totalorder %s128, %s130
      %p137 = scmp.eq.s32.totalorder %s33, 1
      %p138 = por %p136, %p137
      %p139 = scmp.ne.s32.totalorder %s130, %s131
      %p140 = scmp.eq.s32.totalorder %s33, 0
      %p141 = por %p139, %p140
      %p142 = scmp.ne.s32.totalorder %s130, %s131
      %p143 = scmp.eq.s32.totalorder %s34, 1
      %p144 = por %p142, %p143
      %p146 = scmp.ne.s32.totalorder %s131, %s145
      %p147 = scmp.eq.s32.totalorder %s34, 0
      %p148 = por %p146, %p147
      %s150 = sadd.s32 %s149, 1
      %p153 = scmp.eq.s32.totalorder %s28, 1
      %p154 = scmp.ne.s32.totalorder %s149, %s151
      %p155 = scmp.eq.s32.totalorder %s28, 0
      %p156 = por %p154, %p155
      %p157 = scmp.ne.s32.totalorder %s149, %s151
      %p158 = scmp.eq.s32.totalorder %s33, 1
      %p159 = por %p157, %p158
      %p160 = scmp.ne.s32.totalorder %s151, %s152
      %p161 = scmp.eq.s32.totalorder %s33, 0
      %p162 = por %p160, %p161
      %p163 = scmp.ne.s32.totalorder %s151, %s152
      %p164 = scmp.eq.s32.totalorder %s34, 1
      %p165 = por %p163, %p164
      %p167 = scmp.ne.s32.totalorder %s152, %s166
      %p168 = scmp.eq.s32.totalorder %s34, 0
      %p169 = por %p167, %p168
      %s171 = sadd.s32 %s170, 1
      %p174 = scmp.eq.s32.totalorder %s28, 1
      %p175 = scmp.ne.s32.totalorder %s170, %s172
      %p176 = scmp.eq.s32.totalorder %s28, 0
      %p177 = por %p175, %p176
      %p178 = scmp.ne.s32.totalorder %s170, %s172
      %p179 = scmp.eq.s32.totalorder %s33, 1
      %p180 = por %p178, %p179
      %p181 = scmp.ne.s32.totalorder %s172, %s173
      %p182 = scmp.eq.s32.totalorder %s33, 0
      %p183 = por %p181, %p182
      %p184 = scmp.ne.s32.totalorder %s172, %s173
      %p185 = scmp.eq.s32.totalorder %s34, 1
      %p186 = por %p184, %p185
      %p188 = scmp.ne.s32.totalorder %s173, %s187
      %p189 = scmp.eq.s32.totalorder %s34, 0
      %p190 = por %p188, %p189
      %s191 = ssub.s32 %s35, %s47
      %s192 = ssub.s32 %s36, %s43
      %s193 = sor.u32 %s191, %s192
      %p194 = scmp.eq.s32.totalorder %s193, 0
      %s196 = sadd.s32 %s195, 1
      %s197 = scalar_select %p194, %s195, %s196
      %p200 = pneg %p194
      %p201 = scmp.eq.s32.totalorder %s28, 1
      %p202 = por %p200, %p201
      %p203 = scmp.ne.s32.totalorder %s195, %s198
      %p204 = scmp.eq.s32.totalorder %s28, 0
      %p205 = por %p203, %p204
      %p206 = scmp.ne.s32.totalorder %s195, %s198
      %p207 = scmp.eq.s32.totalorder %s33, 1
      %p208 = por %p206, %p207
      %p209 = scmp.ne.s32.totalorder %s198, %s199
      %p210 = scmp.eq.s32.totalorder %s33, 0
      %p211 = por %p209, %p210
      %p212 = scmp.ne.s32.totalorder %s198, %s199
      %p213 = scmp.eq.s32.totalorder %s34, 1
      %p214 = por %p212, %p213
      %p216 = scmp.ne.s32.totalorder %s199, %s215
      %p217 = scmp.eq.s32.totalorder %s34, 0
      %p218 = por %p216, %p217
      %s219 = ssub.s32 %s35, %s47
      %s220 = ssub.s32 %s36, %s43
      %s221 = sor.u32 %s219, %s220
      %p222 = scmp.eq.s32.totalorder %s221, 0
      %s224 = sadd.s32 %s223, 1
      %s225 = scalar_select %p222, %s223, %s224
      %p228 = pneg %p222
      %p229 = scmp.eq.s32.totalorder %s28, 1
      %p230 = por %p228, %p229
      %p231 = scmp.ne.s32.totalorder %s223, %s226
      %p232 = scmp.eq.s32.totalorder %s28, 0
      %p233 = por %p231, %p232
      %p234 = scmp.ne.s32.totalorder %s223, %s226
      %p235 = scmp.eq.s32.totalorder %s33, 1
      %p236 = por %p234, %p235
      %p237 = scmp.ne.s32.totalorder %s226, %s227
      %p238 = scmp.eq.s32.totalorder %s33, 0
      %p239 = por %p237, %p238
      %p240 = scmp.ne.s32.totalorder %s226, %s227
      %p241 = scmp.eq.s32.totalorder %s34, 1
      %p242 = por %p240, %p241
      %p244 = scmp.ne.s32.totalorder %s227, %s243
      %p245 = scmp.eq.s32.totalorder %s34, 0
      %p246 = por %p244, %p245
      %p247 = scmp.le.s32.totalorder 1, %s28
      %p248 = scmp.lt.s32.totalorder %s28, 3
      %p249 = pnand %p247, %p248
      %p250 = pneg %p249
      // Predicated region
      $region9: #{tpu_custom_call.1} parent=5 // pred_check
        _
      $region10: #{tpu_custom_call.1} parent=5 // pred_check_branch
        %252 = sbr.rel (%p249) target = $region12
      $region11: #{tpu_custom_call.1} parent=5 // pred_region
        %s253 = ssub.s32 %s28, 1
        // Predicated region
        $region13: #{tpu_custom_call.1} parent=11 // pred_check
          %p254 = pneg %p141
        $region14: #{tpu_custom_call.1} parent=11 // pred_check_branch
          %256 = sbr.rel (%p254) target = $region16
        $region15: #{tpu_custom_call.1} parent=11 // pred_region
          %s258 = ssub.s32 512, 512
          %259 = vsyncadd [#allocation11], %s258
          %s260 = sshll.u32 [#allocation10], 4
          %s261 = int_to_ptr.vmem [resolvable:$true] %s260
          %266 = dma.hbm_to_vmem [thread:$0]  %s3, 512, %s261, [#allocation11], 128, 128, 8
        $region16: #{tpu_custom_call.1} parent=11 // pred_fallthru
          _
        // Predicated region
        $region17: #{tpu_custom_call.1} parent=11 // pred_check
          %p267 = pneg %p162
        $region18: #{tpu_custom_call.1} parent=11 // pred_check_branch
          %269 = sbr.rel (%p267) target = $region20
        $region19: #{tpu_custom_call.1} parent=11 // pred_region
          %s271 = ssub.s32 512, 512
          %272 = vsyncadd [#allocation11], %s271
          %s273 = sshll.u32 [#allocation12], 4
          %s274 = int_to_ptr.vmem [resolvable:$true] %s273
          %279 = dma.hbm_to_vmem [thread:$0]  %s4, 512, %s274, [#allocation11], 128, 128, 8
        $region20: #{tpu_custom_call.1} parent=11 // pred_fallthru
          _
        // Predicated region
        $region21: #{tpu_custom_call.1} parent=11 // pred_check
          %p280 = pneg %p183
        $region22: #{tpu_custom_call.1} parent=11 // pred_check_branch
          %282 = sbr.rel (%p280) target = $region24
        $region23: #{tpu_custom_call.1} parent=11 // pred_region
          %s284 = ssub.s32 512, 512
          %285 = vsyncadd [#allocation14], %s284
          %s286 = sshll.u32 [#allocation13], 4
          %s287 = int_to_ptr.vmem [resolvable:$true] %s286
          %292 = dma.hbm_to_vmem [thread:$0]  %s5, 512, %s287, [#allocation14], 128, 128, 8
        $region24: #{tpu_custom_call.1} parent=11 // pred_fallthru
          _
      $region12: #{tpu_custom_call.1} parent=5 // pred_fallthru
        _
      %p293 = scmp.lt.s32.totalorder %s28, 2
      // Predicated region
      $region25: #{tpu_custom_call.1} parent=5 // pred_check
        %p294 = pneg %p293
      $region26: #{tpu_custom_call.1} parent=5 // pred_check_branch
        %296 = sbr.rel (%p294) target = $region28
      $region27: #{tpu_custom_call.1} parent=5 // pred_region
        // Predicated region
        $region29: #{tpu_custom_call.1} parent=27 // pred_check
          %p297 = pneg %p62
        $region30: #{tpu_custom_call.1} parent=27 // pred_check_branch
          %299 = sbr.rel (%p297) target = $region32
        $region31: #{tpu_custom_call.1} parent=27 // pred_region
          %s300 = sand.u32 %s52, 1
          %s301 = scalar_lea.sflag [#allocation5], %s300
          %s302 = sand.u32 %s52, 1
          %s303 = smul.addr %s302, 8
          %s304 = scalar_lea.vmem [#allocation4], %s303
          %s306 = ssub.s32 128, 128
          %307 = vsyncadd %s301, %s306
          %s308 = sadd.s32 %s36, %s35
          %s309 = smul.addr %s308, 128
          %s310 = scalar_lea.hbm %s0, %s309
          %s312 = sshll.u32 %s304, 4
          %s313 = int_to_ptr.vmem [resolvable:$true] %s312
          %315 = dma.hbm_to_vmem [thread:$0]  %s310, 128, %s313, %s301
        $region32: #{tpu_custom_call.1} parent=27 // pred_fallthru
          _
        // Predicated region
        $region33: #{tpu_custom_call.1} parent=27 // pred_check
          %p316 = pneg %p88
        $region34: #{tpu_custom_call.1} parent=27 // pred_check_branch
          %318 = sbr.rel (%p316) target = $region36
        $region35: #{tpu_custom_call.1} parent=27 // pred_region
          %s319 = sand.u32 %s28, 1
          %s320 = scalar_lea.sflag [#allocation8], %s319
          %s321 = sand.u32 %s78, 1
          %s322 = smul.addr %s321, 8
          %s323 = scalar_lea.vmem [#allocation7], %s322
          %s325 = ssub.s32 128, 128
          %326 = vsyncadd %s320, %s325
          %s327 = smul.addr %s35, 128
          %s328 = scalar_lea.hbm %s1, %s327
          %s330 = sshll.u32 %s323, 4
          %s331 = int_to_ptr.vmem [resolvable:$true] %s330
          %333 = dma.hbm_to_vmem [thread:$0]  %s328, 128, %s331, %s320
        $region36: #{tpu_custom_call.1} parent=27 // pred_fallthru
          _
        // Predicated region
        $region37: #{tpu_custom_call.1} parent=27 // pred_check
          %p334 = pneg %p114
        $region38: #{tpu_custom_call.1} parent=27 // pred_check_branch
          %336 = sbr.rel (%p334) target = $region40
        $region39: #{tpu_custom_call.1} parent=27 // pred_region
          %s337 = sand.u32 %s28, 1
          %s338 = scalar_lea.sflag [#allocation8], %s337
          %s339 = sand.u32 %s104, 1
          %s340 = smul.addr %s339, 8
          %s341 = scalar_lea.vmem [#allocation9], %s340
          %s343 = ssub.s32 128, 128
          %344 = vsyncadd %s338, %s343
          %s345 = smul.addr %s35, 128
          %s346 = scalar_lea.hbm %s2, %s345
          %s348 = sshll.u32 %s341, 4
          %s349 = int_to_ptr.vmem [resolvable:$true] %s348
          %351 = dma.hbm_to_vmem [thread:$0]  %s346, 128, %s349, %s338
        $region40: #{tpu_custom_call.1} parent=27 // pred_fallthru
          _
      $region28: #{tpu_custom_call.1} parent=5 // pred_fallthru
        _
      %p352 = scmp.le.s32.totalorder 1, %s28
      %p353 = scmp.lt.s32.totalorder %s28, 3
      %p354 = pnand %p352, %p353
      %p355 = pneg %p354
      // Predicated region
      $region41: #{tpu_custom_call.1} parent=5 // pred_check
        _
      $region42: #{tpu_custom_call.1} parent=5 // pred_check_branch
        %357 = sbr.rel (%p354) target = $region44
      $region43: #{tpu_custom_call.1} parent=5 // pred_region
        %s358 = ssub.s32 %s28, 1
        %s359 = sand.u32 %s55, 1
        %s360 = scalar_lea.sflag [#allocation5], %s359
        %s361 = sand.u32 %s55, 1
        %s362 = smul.addr %s361, 8
        %s363 = scalar_lea.vmem [#allocation4], %s362
        // Predicated region
        $region45: #{tpu_custom_call.1} parent=43 // pred_check
          %p364 = pneg %p68
        $region46: #{tpu_custom_call.1} parent=43 // pred_check_branch
          %366 = sbr.rel (%p364) target = $region48
        $region47: #{tpu_custom_call.1} parent=43 // pred_region
          %367 = dma.done %s360, 128
        $region48: #{tpu_custom_call.1} parent=43 // pred_fallthru
          _
        %s368 = sand.u32 %s33, 1
        %s369 = scalar_lea.sflag [#allocation8], %s368
        %s370 = sand.u32 %s81, 1
        %s371 = smul.addr %s370, 8
        %s372 = scalar_lea.vmem [#allocation7], %s371
        // Predicated region
        $region49: #{tpu_custom_call.1} parent=43 // pred_check
          %p373 = pneg %p94
        $region50: #{tpu_custom_call.1} parent=43 // pred_check_branch
          %375 = sbr.rel (%p373) target = $region52
        $region51: #{tpu_custom_call.1} parent=43 // pred_region
          %376 = dma.done %s369, 128
        $region52: #{tpu_custom_call.1} parent=43 // pred_fallthru
          _
        %s377 = sand.u32 %s33, 1
        %s378 = scalar_lea.sflag [#allocation8], %s377
        %s379 = sand.u32 %s107, 1
        %s380 = smul.addr %s379, 8
        %s381 = scalar_lea.vmem [#allocation9], %s380
        // Predicated region
        $region53: #{tpu_custom_call.1} parent=43 // pred_check
          %p382 = pneg %p120
        $region54: #{tpu_custom_call.1} parent=43 // pred_check_branch
          %384 = sbr.rel (%p382) target = $region56
        $region55: #{tpu_custom_call.1} parent=43 // pred_region
          %385 = dma.done %s378, 128
        $region56: #{tpu_custom_call.1} parent=43 // pred_fallthru
          _
        // Predicated region
        $region57: #{tpu_custom_call.1} parent=43 // pred_check
          %p386 = pneg %p141
        $region58: #{tpu_custom_call.1} parent=43 // pred_check_branch
          %388 = sbr.rel (%p386) target = $region60
        $region59: #{tpu_custom_call.1} parent=43 // pred_region
          %389 = dma.done [#allocation11], 512
        $region60: #{tpu_custom_call.1} parent=43 // pred_fallthru
          _
        // Predicated region
        $region61: #{tpu_custom_call.1} parent=43 // pred_check
          %p390 = pneg %p162
        $region62: #{tpu_custom_call.1} parent=43 // pred_check_branch
          %392 = sbr.rel (%p390) target = $region64
        $region63: #{tpu_custom_call.1} parent=43 // pred_region
          %393 = dma.done [#allocation11], 512
        $region64: #{tpu_custom_call.1} parent=43 // pred_fallthru
          _
        // Predicated region
        $region65: #{tpu_custom_call.1} parent=43 // pred_check
          %p394 = pneg %p183
        $region66: #{tpu_custom_call.1} parent=43 // pred_check_branch
          %396 = sbr.rel (%p394) target = $region68
        $region67: #{tpu_custom_call.1} parent=43 // pred_region
          %397 = dma.done [#allocation14], 512
        $region68: #{tpu_custom_call.1} parent=43 // pred_fallthru
          _
        %s398 = sand.u32 %s55, 1
        %s399 = scalar_lea.sflag [#allocation5], %s398
        %s400 = sand.u32 %s55, 1
        %s401 = smul.addr %s400, 8
        %s402 = scalar_lea.vmem [#allocation4], %s401
        %p403 = pneg %p68
        %p404 = pneg %p65
        %s405 = sand.u32 %s33, 1
        %s406 = scalar_lea.sflag [#allocation8], %s405
        %s407 = sand.u32 %s81, 1
        %s408 = smul.addr %s407, 8
        %s409 = scalar_lea.vmem [#allocation7], %s408
        %p410 = pneg %p94
        %p411 = pneg %p91
        %s412 = sand.u32 %s33, 1
        %s413 = scalar_lea.sflag [#allocation8], %s412
        %s414 = sand.u32 %s107, 1
        %s415 = smul.addr %s414, 8
        %s416 = scalar_lea.vmem [#allocation9], %s415
        %p417 = pneg %p120
        %p418 = pneg %p117
        %p419 = pneg %p141
        %p420 = pneg %p138
        %p421 = pneg %p162
        %p422 = pneg %p159
        %p423 = pneg %p183
        %p424 = pneg %p180
        %p425 = pneg %p211
        %p426 = pneg %p208
        %s427 = sand.u32 %s198, 1
        %s428 = scalar_lea.sflag [#allocation6], %s427
        %s429 = sand.u32 %s198, 1
        %s430 = smul.addr %s429, 8
        %s431 = scalar_lea.vmem [#allocation15], %s430
        %p432 = pneg %p239
        %p433 = pneg %p236
        %s434 = sand.u32 %s226, 1
        %s435 = scalar_lea.sflag [#allocation17], %s434
        %s436 = sand.u32 %s226, 1
        %s437 = smul.addr %s436, 8
        %s438 = scalar_lea.vmem [#allocation16], %s437
        %p439 = scmp.eq.s32.totalorder %s38, 0
        // Predicated region
        $region69: #{tpu_custom_call.1} parent=43 // pred_check
          %p440 = pneg %p439
        $region70: #{tpu_custom_call.1} parent=43 // pred_check_branch
          %442 = sbr.rel (%p440) target = $region72
        $region71: #{tpu_custom_call.1} parent=43 // pred_region
          %v443 = vld [vmem:[%s372] sm:$0xff]
          %v444 = vld [vmem:[#allocation12] sm:$0xff]
          %v445 = vld [vmem:[#allocation12 + $0x8] sm:$0xff]
          %v446 = vld [vmem:[#allocation12 + $0x10] sm:$0xff]
          %v447 = vld [vmem:[#allocation12 + $0x18] sm:$0xff]
          %vm448 = vcmask 261120
          %v450 = vsel %vm448, %v443, 0
          %v453 = vsel %vm448, %v444, 0
          %v456 = vsel %vm448, %v445, 0
          %v459 = vsel %vm448, %v446, 0
          %v462 = vsel %vm448, %v447, 0
          %464 = vmatprep.subr.mxu0 0.0
          %465 = vmatpush1.xpose.msra.mxu0 %v453
          %466 = vmatprep.subr.mxu0 0.0
          %467 = vmatpush1.xpose.msra.mxu0 %v456
          %468 = vmatprep.subr.mxu0 0.0
          %469 = vmatpush1.xpose.msra.mxu0 %v459
          %470 = vmatprep.subr.mxu0 0.0
          %471 = vmatpush1.xpose.msra.mxu0 %v462
          %472 = vmatprep.subr.mxu0 0.0
          %473 = vmatpush1.xpose.msra.mxu0 0.0
          %474 = vmatprep.subr.mxu0 0.0
          %475 = vmatpush1.xpose.msra.mxu0 0.0
          %476 = vmatprep.subr.mxu0 0.0
          %477 = vmatpush1.xpose.msra.mxu0 0.0
          %478 = vmatprep.subr.mxu0 0.0
          %479 = vmatpush1.xpose.msra.mxu0 0.0
          %480 = vmatprep.subr.mxu0 0.0
          %481 = vmatpush1.xpose.msra.mxu0 0.0
          %482 = vmatprep.subr.mxu0 0.0
          %483 = vmatpush1.xpose.msra.mxu0 0.0
          %484 = vmatprep.subr.mxu0 0.0
          %485 = vmatpush1.xpose.msra.mxu0 0.0
          %486 = vmatprep.subr.mxu0 0.0
          %487 = vmatpush1.xpose.msra.mxu0 0.0
          %488 = vmatprep.subr.mxu0 0.0
          %489 = vmatpush1.xpose.msra.mxu0 0.0
          %490 = vmatprep.subr.mxu0 0.0
          %491 = vmatpush1.xpose.msra.mxu0 0.0
          %492 = vmatprep.subr.mxu0 0.0
          %493 = vmatpush1.xpose.msra.mxu0 0.0
          %494 = vmatprep.subr.mxu0 0.0
          %495 = vmatpush1.xpose.msra.mxu0 0.0
          %496 = vmatprep.subr.mxu0 0.0
          %497 = vmatpush1.xpose.msra.mxu0 0.0
          %498 = vmatprep.subr.mxu0 0.0
          %499 = vmatpush1.xpose.msra.mxu0 0.0
          %500 = vmatprep.subr.mxu0 0.0
          %501 = vmatpush1.xpose.msra.mxu0 0.0
          %502 = vmatprep.subr.mxu0 0.0
          %503 = vmatpush1.xpose.msra.mxu0 0.0
          %504 = vmatprep.subr.mxu0 0.0
          %505 = vmatpush1.xpose.msra.mxu0 0.0
          %506 = vmatprep.subr.mxu0 0.0
          %507 = vmatpush1.xpose.msra.mxu0 0.0
          %508 = vmatprep.subr.mxu0 0.0
          %509 = vmatpush1.xpose.msra.mxu0 0.0
          %510 = vmatprep.subr.mxu0 0.0
          %511 = vmatpush1.xpose.msra.mxu0 0.0
          %512 = vmatprep.subr.mxu0 0.0
          %513 = vmatpush1.xpose.msra.mxu0 0.0
          %514 = vmatprep.subr.mxu0 0.0
          %515 = vmatpush1.xpose.msra.mxu0 0.0
          %516 = vmatprep.subr.mxu0 0.0
          %517 = vmatpush1.xpose.msra.mxu0 0.0
          %518 = vmatprep.subr.mxu0 0.0
          %519 = vmatpush1.xpose.msra.mxu0 0.0
          %520 = vmatprep.subr.mxu0 0.0
          %521 = vmatpush1.xpose.msra.mxu0 0.0
          %522 = vmatprep.subr.mxu0 0.0
          %523 = vmatpush1.xpose.msra.mxu0 0.0
          %524 = vmatprep.subr.mxu0 0.0
          %525 = vmatpush1.xpose.msra.mxu0 0.0
          %526 = vmatprep.subr.mxu0 0.0
          %527 = vmatpush1.xpose.msra.mxu0 0.0
          %528 = vmatprep.mubr.f32.mxu0 0.0
          %529 = vmatmul.mubr.f32.gmra.mrb[0].mxu0 %v450
          %v530 = vpop.f32.mrb[0].mxu0
          %v531 = vadd.f32 0.0, %v530
          %v532 = vpop.f32.mrb[0].mxu0
          %533 = vdwg.mxu0
          %534 = vst.msk [vmem:[#allocation2] sm:$0xff] %vm448, %v531
          %v535 = vld [vmem:[%s381] sm:$0xff]
          %v536 = vld [vmem:[#allocation13] sm:$0xff]
          %v537 = vld [vmem:[#allocation13 + $0x8] sm:$0xff]
          %v538 = vld [vmem:[#allocation13 + $0x10] sm:$0xff]
          %v539 = vld [vmem:[#allocation13 + $0x18] sm:$0xff]
          %v541 = vsel %vm448, %v535, 0
          %v544 = vsel %vm448, %v536, 0
          %v547 = vsel %vm448, %v537, 0
          %v550 = vsel %vm448, %v538, 0
          %v553 = vsel %vm448, %v539, 0
          %555 = vmatprep.subr.mxu0 0.0
          %556 = vmatpush1.xpose.msra.mxu0 %v544
          %557 = vmatprep.subr.mxu0 0.0
          %558 = vmatpush1.xpose.msra.mxu0 %v547
          %559 = vmatprep.subr.mxu0 0.0
          %560 = vmatpush1.xpose.msra.mxu0 %v550
          %561 = vmatprep.subr.mxu0 0.0
          %562 = vmatpush1.xpose.msra.mxu0 %v553
          %563 = vmatprep.subr.mxu0 0.0
          %564 = vmatpush1.xpose.msra.mxu0 0.0
          %565 = vmatprep.subr.mxu0 0.0
          %566 = vmatpush1.xpose.msra.mxu0 0.0
          %567 = vmatprep.subr.mxu0 0.0
          %568 = vmatpush1.xpose.msra.mxu0 0.0
          %569 = vmatprep.subr.mxu0 0.0
          %570 = vmatpush1.xpose.msra.mxu0 0.0
          %571 = vmatprep.subr.mxu0 0.0
          %572 = vmatpush1.xpose.msra.mxu0 0.0
          %573 = vmatprep.subr.mxu0 0.0
          %574 = vmatpush1.xpose.msra.mxu0 0.0
          %575 = vmatprep.subr.mxu0 0.0
          %576 = vmatpush1.xpose.msra.mxu0 0.0
          %577 = vmatprep.subr.mxu0 0.0
          %578 = vmatpush1.xpose.msra.mxu0 0.0
          %579 = vmatprep.subr.mxu0 0.0
          %580 = vmatpush1.xpose.msra.mxu0 0.0
          %581 = vmatprep.subr.mxu0 0.0
          %582 = vmatpush1.xpose.msra.mxu0 0.0
          %583 = vmatprep.subr.mxu0 0.0
          %584 = vmatpush1.xpose.msra.mxu0 0.0
          %585 = vmatprep.subr.mxu0 0.0
          %586 = vmatpush1.xpose.msra.mxu0 0.0
          %587 = vmatprep.subr.mxu0 0.0
          %588 = vmatpush1.xpose.msra.mxu0 0.0
          %589 = vmatprep.subr.mxu0 0.0
          %590 = vmatpush1.xpose.msra.mxu0 0.0
          %591 = vmatprep.subr.mxu0 0.0
          %592 = vmatpush1.xpose.msra.mxu0 0.0
          %593 = vmatprep.subr.mxu0 0.0
          %594 = vmatpush1.xpose.msra.mxu0 0.0
          %595 = vmatprep.subr.mxu0 0.0
          %596 = vmatpush1.xpose.msra.mxu0 0.0
          %597 = vmatprep.subr.mxu0 0.0
          %598 = vmatpush1.xpose.msra.mxu0 0.0
          %599 = vmatprep.subr.mxu0 0.0
          %600 = vmatpush1.xpose.msra.mxu0 0.0
          %601 = vmatprep.subr.mxu0 0.0
          %602 = vmatpush1.xpose.msra.mxu0 0.0
          %603 = vmatprep.subr.mxu0 0.0
          %604 = vmatpush1.xpose.msra.mxu0 0.0
          %605 = vmatprep.subr.mxu0 0.0
          %606 = vmatpush1.xpose.msra.mxu0 0.0
          %607 = vmatprep.subr.mxu0 0.0
          %608 = vmatpush1.xpose.msra.mxu0 0.0
          %609 = vmatprep.subr.mxu0 0.0
          %610 = vmatpush1.xpose.msra.mxu0 0.0
          %611 = vmatprep.subr.mxu0 0.0
          %612 = vmatpush1.xpose.msra.mxu0 0.0
          %613 = vmatprep.subr.mxu0 0.0
          %614 = vmatpush1.xpose.msra.mxu0 0.0
          %615 = vmatprep.subr.mxu0 0.0
          %616 = vmatpush1.xpose.msra.mxu0 0.0
          %617 = vmatprep.subr.mxu0 0.0
          %618 = vmatpush1.xpose.msra.mxu0 0.0
          %619 = vmatprep.mubr.f32.mxu0 0.0
          %620 = vmatmul.mubr.f32.gmra.mrb[0].mxu0 %v541
          %v621 = vpop.f32.mrb[0].mxu0
          %v622 = vadd.f32 0.0, %v621
          %v623 = vpop.f32.mrb[0].mxu0
          %624 = vdwg.mxu0
          %625 = vst.msk [vmem:[#allocation3] sm:$0xff] %vm448, %v622
        $region72: #{tpu_custom_call.1} parent=43 // pred_fallthru
          _
        %v626 = vld [vmem:[%s363] sm:$0xff]
        %v627 = vld [vmem:[#allocation10] sm:$0xff]
        %v628 = vld [vmem:[#allocation10 + $0x8] sm:$0xff]
        %v629 = vld [vmem:[#allocation10 + $0x10] sm:$0xff]
        %v630 = vld [vmem:[#allocation10 + $0x18] sm:$0xff]
        %vm631 = vcmask 261120
        %v633 = vsel %vm631, %v626, 0
        %v636 = vsel %vm631, %v627, 0
        %v639 = vsel %vm631, %v628, 0
        %v642 = vsel %vm631, %v629, 0
        %v645 = vsel %vm631, %v630, 0
        %647 = vmatprep.subr.mxu0 0.0
        %648 = vmatpush1.xpose.msra.mxu0 %v636
        %649 = vmatprep.subr.mxu0 0.0
        %650 = vmatpush1.xpose.msra.mxu0 %v639
        %651 = vmatprep.subr.mxu0 0.0
        %652 = vmatpush1.xpose.msra.mxu0 %v642
        %653 = vmatprep.subr.mxu0 0.0
        %654 = vmatpush1.xpose.msra.mxu0 %v645
        %655 = vmatprep.subr.mxu0 0.0
        %656 = vmatpush1.xpose.msra.mxu0 0.0
        %657 = vmatprep.subr.mxu0 0.0
        %658 = vmatpush1.xpose.msra.mxu0 0.0
        %659 = vmatprep.subr.mxu0 0.0
        %660 = vmatpush1.xpose.msra.mxu0 0.0
        %661 = vmatprep.subr.mxu0 0.0
        %662 = vmatpush1.xpose.msra.mxu0 0.0
        %663 = vmatprep.subr.mxu0 0.0
        %664 = vmatpush1.xpose.msra.mxu0 0.0
        %665 = vmatprep.subr.mxu0 0.0
        %666 = vmatpush1.xpose.msra.mxu0 0.0
        %667 = vmatprep.subr.mxu0 0.0
        %668 = vmatpush1.xpose.msra.mxu0 0.0
        %669 = vmatprep.subr.mxu0 0.0
        %670 = vmatpush1.xpose.msra.mxu0 0.0
        %671 = vmatprep.subr.mxu0 0.0
        %672 = vmatpush1.xpose.msra.mxu0 0.0
        %673 = vmatprep.subr.mxu0 0.0
        %674 = vmatpush1.xpose.msra.mxu0 0.0
        %675 = vmatprep.subr.mxu0 0.0
        %676 = vmatpush1.xpose.msra.mxu0 0.0
        %677 = vmatprep.subr.mxu0 0.0
        %678 = vmatpush1.xpose.msra.mxu0 0.0
        %679 = vmatprep.subr.mxu0 0.0
        %680 = vmatpush1.xpose.msra.mxu0 0.0
        %681 = vmatprep.subr.mxu0 0.0
        %682 = vmatpush1.xpose.msra.mxu0 0.0
        %683 = vmatprep.subr.mxu0 0.0
        %684 = vmatpush1.xpose.msra.mxu0 0.0
        %685 = vmatprep.subr.mxu0 0.0
        %686 = vmatpush1.xpose.msra.mxu0 0.0
        %687 = vmatprep.subr.mxu0 0.0
        %688 = vmatpush1.xpose.msra.mxu0 0.0
        %689 = vmatprep.subr.mxu0 0.0
        %690 = vmatpush1.xpose.msra.mxu0 0.0
        %691 = vmatprep.subr.mxu0 0.0
        %692 = vmatpush1.xpose.msra.mxu0 0.0
        %693 = vmatprep.subr.mxu0 0.0
        %694 = vmatpush1.xpose.msra.mxu0 0.0
        %695 = vmatprep.subr.mxu0 0.0
        %696 = vmatpush1.xpose.msra.mxu0 0.0
        %697 = vmatprep.subr.mxu0 0.0
        %698 = vmatpush1.xpose.msra.mxu0 0.0
        %699 = vmatprep.subr.mxu0 0.0
        %700 = vmatpush1.xpose.msra.mxu0 0.0
        %701 = vmatprep.subr.mxu0 0.0
        %702 = vmatpush1.xpose.msra.mxu0 0.0
        %703 = vmatprep.subr.mxu0 0.0
        %704 = vmatpush1.xpose.msra.mxu0 0.0
        %705 = vmatprep.subr.mxu0 0.0
        %706 = vmatpush1.xpose.msra.mxu0 0.0
        %707 = vmatprep.subr.mxu0 0.0
        %708 = vmatpush1.xpose.msra.mxu0 0.0
        %709 = vmatprep.subr.mxu0 0.0
        %710 = vmatpush1.xpose.msra.mxu0 0.0
        %711 = vmatprep.mubr.f32.mxu0 0.0
        %712 = vmatmul.mubr.f32.gmra.mrb[0].mxu0 %v633
        %v713 = vpop.f32.mrb[0].mxu0
        %v714 = vadd.f32 0.0, %v713
        %v715 = vpop.f32.mrb[0].mxu0
        %716 = vdwg.mxu0
        %v717 = vld [vmem:[#allocation2] sm:$0xff]
        %v719 = vsel %vm631, %v714, 0
        %v722 = vsel %vm631, %v717, 0
        %724 = vmatprep.subr.mxu0 0.0
        %725 = vmatpush1.xpose.msra.mxu0 %v722
        %726 = vmatprep.subr.mxu0 0.0
        %727 = vmatpush1.xpose.msra.mxu0 0.0
        %728 = vmatprep.subr.mxu0 0.0
        %729 = vmatpush1.xpose.msra.mxu0 0.0
        %730 = vmatprep.subr.mxu0 0.0
        %731 = vmatpush1.xpose.msra.mxu0 0.0
        %732 = vmatprep.subr.mxu0 0.0
        %733 = vmatpush1.xpose.msra.mxu0 0.0
        %734 = vmatprep.subr.mxu0 0.0
        %735 = vmatpush1.xpose.msra.mxu0 0.0
        %736 = vmatprep.subr.mxu0 0.0
        %737 = vmatpush1.xpose.msra.mxu0 0.0
        %738 = vmatprep.subr.mxu0 0.0
        %739 = vmatpush1.xpose.msra.mxu0 0.0
        %740 = vmatprep.subr.mxu0 0.0
        %741 = vmatpush1.xpose.msra.mxu0 0.0
        %742 = vmatprep.subr.mxu0 0.0
        %743 = vmatpush1.xpose.msra.mxu0 0.0
        %744 = vmatprep.subr.mxu0 0.0
        %745 = vmatpush1.xpose.msra.mxu0 0.0
        %746 = vmatprep.subr.mxu0 0.0
        %747 = vmatpush1.xpose.msra.mxu0 0.0
        %748 = vmatprep.subr.mxu0 0.0
        %749 = vmatpush1.xpose.msra.mxu0 0.0
        %750 = vmatprep.subr.mxu0 0.0
        %751 = vmatpush1.xpose.msra.mxu0 0.0
        %752 = vmatprep.subr.mxu0 0.0
        %753 = vmatpush1.xpose.msra.mxu0 0.0
        %754 = vmatprep.subr.mxu0 0.0
        %755 = vmatpush1.xpose.msra.mxu0 0.0
        %756 = vmatprep.subr.mxu0 0.0
        %757 = vmatpush1.xpose.msra.mxu0 0.0
        %758 = vmatprep.subr.mxu0 0.0
        %759 = vmatpush1.xpose.msra.mxu0 0.0
        %760 = vmatprep.subr.mxu0 0.0
        %761 = vmatpush1.xpose.msra.mxu0 0.0
        %762 = vmatprep.subr.mxu0 0.0
        %763 = vmatpush1.xpose.msra.mxu0 0.0
        %764 = vmatprep.subr.mxu0 0.0
        %765 = vmatpush1.xpose.msra.mxu0 0.0
        %766 = vmatprep.subr.mxu0 0.0
        %767 = vmatpush1.xpose.msra.mxu0 0.0
        %768 = vmatprep.subr.mxu0 0.0
        %769 = vmatpush1.xpose.msra.mxu0 0.0
        %770 = vmatprep.subr.mxu0 0.0
        %771 = vmatpush1.xpose.msra.mxu0 0.0
        %772 = vmatprep.subr.mxu0 0.0
        %773 = vmatpush1.xpose.msra.mxu0 0.0
        %774 = vmatprep.subr.mxu0 0.0
        %775 = vmatpush1.xpose.msra.mxu0 0.0
        %776 = vmatprep.subr.mxu0 0.0
        %777 = vmatpush1.xpose.msra.mxu0 0.0
        %778 = vmatprep.subr.mxu0 0.0
        %779 = vmatpush1.xpose.msra.mxu0 0.0
        %780 = vmatprep.subr.mxu0 0.0
        %781 = vmatpush1.xpose.msra.mxu0 0.0
        %782 = vmatprep.subr.mxu0 0.0
        %783 = vmatpush1.xpose.msra.mxu0 0.0
        %784 = vmatprep.subr.mxu0 0.0
        %785 = vmatpush1.xpose.msra.mxu0 0.0
        %786 = vmatprep.subr.mxu0 0.0
        %787 = vmatpush1.xpose.msra.mxu0 0.0
        %788 = vmatprep.mubr.f32.mxu0 0.0
        %789 = vmatmul.mubr.f32.gmra.mrb[0].mxu0 %v719
        %v790 = vpop.f32.mrb[0].mxu0
        %v791 = vadd.f32 0.0, %v790
        %v792 = vpop.f32.mrb[0].mxu0
        %793 = vdwg.mxu0
        %vm794 = vcmask 64512
        %v795 = vsel %vm794, %v791, -inf
        %796 = vmax.xlane.f32.xlu0 %v795
        %v797 = vpop.xlane.xlu0 %796
        %v798 = vsub.f32 %v791, %v797
        %v799 = vmul.f32 %v798, 1.442695
        %v800 = vpow.pop %v799
        %v801 = vsel %vm794, %v800, 0.0
        %802 = vadd.xlane.f32.xlu0 %v801
        %v803 = vpop.xlane.xlu0 %802
        %v804 = vrcp.pop %v803
        %v805 = vmul.f32 %v800, %v804
        %806 = vst.msk [vmem:[%s438] sm:$0xff] %vm794, %v805
        %v807 = vld [vmem:[#allocation3] sm:$0xff]
        %v809 = vsel %vm794, %v805, 0
        %811 = vmatprep.subr.mxu0 0.0
        %812 = vmatpush1.msra.mxu0 %v807
        %813 = vmatprep.subr.mxu0 0.0
        %814 = vmatpush1.msra.mxu0 0.0
        %815 = vmatprep.subr.mxu0 0.0
        %816 = vmatpush1.msra.mxu0 0.0
        %817 = vmatprep.subr.mxu0 0.0
        %818 = vmatpush1.msra.mxu0 0.0
        %819 = vmatprep.subr.mxu0 0.0
        %820 = vmatpush1.msra.mxu0 0.0
        %821 = vmatprep.subr.mxu0 0.0
        %822 = vmatpush1.msra.mxu0 0.0
        %823 = vmatprep.subr.mxu0 0.0
        %824 = vmatpush1.msra.mxu0 0.0
        %825 = vmatprep.subr.mxu0 0.0
        %826 = vmatpush1.msra.mxu0 0.0
        %827 = vmatprep.subr.mxu0 0.0
        %828 = vmatpush1.msra.mxu0 0.0
        %829 = vmatprep.subr.mxu0 0.0
        %830 = vmatpush1.msra.mxu0 0.0
        %831 = vmatprep.subr.mxu0 0.0
        %832 = vmatpush1.msra.mxu0 0.0
        %833 = vmatprep.subr.mxu0 0.0
        %834 = vmatpush1.msra.mxu0 0.0
        %835 = vmatprep.subr.mxu0 0.0
        %836 = vmatpush1.msra.mxu0 0.0
        %837 = vmatprep.subr.mxu0 0.0
        %838 = vmatpush1.msra.mxu0 0.0
        %839 = vmatprep.subr.mxu0 0.0
        %840 = vmatpush1.msra.mxu0 0.0
        %841 = vmatprep.subr.mxu0 0.0
        %842 = vmatpush1.msra.mxu0 0.0
        %843 = vmatprep.subr.mxu0 0.0
        %844 = vmatpush1.msra.mxu0 0.0
        %845 = vmatprep.subr.mxu0 0.0
        %846 = vmatpush1.msra.mxu0 0.0
        %847 = vmatprep.subr.mxu0 0.0
        %848 = vmatpush1.msra.mxu0 0.0
        %849 = vmatprep.subr.mxu0 0.0
        %850 = vmatpush1.msra.mxu0 0.0
        %851 = vmatprep.subr.mxu0 0.0
        %852 = vmatpush1.msra.mxu0 0.0
        %853 = vmatprep.subr.mxu0 0.0
        %854 = vmatpush1.msra.mxu0 0.0
        %855 = vmatprep.subr.mxu0 0.0
        %856 = vmatpush1.msra.mxu0 0.0
        %857 = vmatprep.subr.mxu0 0.0
        %858 = vmatpush1.msra.mxu0 0.0
        %859 = vmatprep.subr.mxu0 0.0
        %860 = vmatpush1.msra.mxu0 0.0
        %861 = vmatprep.subr.mxu0 0.0
        %862 = vmatpush1.msra.mxu0 0.0
        %863 = vmatprep.subr.mxu0 0.0
        %864 = vmatpush1.msra.mxu0 0.0
        %865 = vmatprep.subr.mxu0 0.0
        %866 = vmatpush1.msra.mxu0 0.0
        %867 = vmatprep.subr.mxu0 0.0
        %868 = vmatpush1.msra.mxu0 0.0
        %869 = vmatprep.subr.mxu0 0.0
        %870 = vmatpush1.msra.mxu0 0.0
        %871 = vmatprep.subr.mxu0 0.0
        %872 = vmatpush1.msra.mxu0 0.0
        %873 = vmatprep.subr.mxu0 0.0
        %874 = vmatpush1.msra.mxu0 0.0
        %875 = vmatprep.mubr.f32.mxu0 0.0
        %876 = vmatmul.mubr.f32.gmra.mrb[0].mxu0 %v809
        %v877 = vpop.f32.mrb[0].mxu0
        %v878 = vadd.f32 0.0, %v877
        %v879 = vpop.f32.mrb[0].mxu0
        %880 = vdwg.mxu0
        %881 = vst.msk [vmem:[%s431] sm:$0xff] %vm631, %v878
        %s882 = sand.u32 %s198, 1
        %s883 = scalar_lea.sflag [#allocation6], %s882
        %s884 = sand.u32 %s198, 1
        %s885 = smul.addr %s884, 8
        %s886 = scalar_lea.vmem [#allocation15], %s885
        %s887 = sand.u32 %s226, 1
        %s888 = scalar_lea.sflag [#allocation17], %s887
        %s889 = sand.u32 %s226, 1
        %s890 = smul.addr %s889, 8
        %s891 = scalar_lea.vmem [#allocation16], %s890
        // Predicated region
        $region73: #{tpu_custom_call.1} parent=43 // pred_check
          %p892 = pneg %p208
        $region74: #{tpu_custom_call.1} parent=43 // pred_check_branch
          %894 = sbr.rel (%p892) target = $region76
        $region75: #{tpu_custom_call.1} parent=43 // pred_region
          %s896 = ssub.s32 128, 128
          %897 = vsyncadd %s883, %s896
          %s898 = sadd.s32 %s38, %s37
          %s899 = smul.addr %s898, 128
          %s900 = scalar_lea.hbm %s6, %s899
          %s902 = sshll.u32 %s886, 4
          %s903 = int_to_ptr.vmem [resolvable:$true] %s902
          %905 = dma.vmem_to_hbm [thread:$0]  %s903, 128, %s900, %s883
        $region76: #{tpu_custom_call.1} parent=43 // pred_fallthru
          _
        // Predicated region
        $region77: #{tpu_custom_call.1} parent=43 // pred_check
          %p906 = pneg %p236
        $region78: #{tpu_custom_call.1} parent=43 // pred_check_branch
          %908 = sbr.rel (%p906) target = $region80
        $region79: #{tpu_custom_call.1} parent=43 // pred_region
          %s910 = ssub.s32 128, 128
          %911 = vsyncadd %s888, %s910
          %s912 = sadd.s32 %s38, %s37
          %s913 = smul.addr %s912, 128
          %s914 = scalar_lea.hbm %s7, %s913
          %s916 = sshll.u32 %s891, 4
          %s917 = int_to_ptr.vmem [resolvable:$true] %s916
          %919 = dma.vmem_to_hbm [thread:$0]  %s917, 128, %s914, %s888
        $region80: #{tpu_custom_call.1} parent=43 // pred_fallthru
          _
      $region44: #{tpu_custom_call.1} parent=5 // pred_fallthru
        _
      %p920 = scmp.le.s32.totalorder 2, %s28
      // Predicated region
      $region81: #{tpu_custom_call.1} parent=5 // pred_check
        %p921 = pneg %p920
      $region82: #{tpu_custom_call.1} parent=5 // pred_check_branch
        %923 = sbr.rel (%p921) target = $region84
      $region83: #{tpu_custom_call.1} parent=5 // pred_region
        %s924 = ssub.s32 %s28, 2
        // Predicated region
        $region85: #{tpu_custom_call.1} parent=83 // pred_check
          %p925 = pneg %p214
        $region86: #{tpu_custom_call.1} parent=83 // pred_check_branch
          %927 = sbr.rel (%p925) target = $region88
        $region87: #{tpu_custom_call.1} parent=83 // pred_region
          %s928 = sand.u32 %s199, 1
          %s929 = scalar_lea.sflag [#allocation6], %s928
          %s930 = sand.u32 %s199, 1
          %s931 = smul.addr %s930, 8
          %s932 = scalar_lea.vmem [#allocation15], %s931
          %933 = dma.done %s929, 128
        $region88: #{tpu_custom_call.1} parent=83 // pred_fallthru
          _
        // Predicated region
        $region89: #{tpu_custom_call.1} parent=83 // pred_check
          %p934 = pneg %p242
        $region90: #{tpu_custom_call.1} parent=83 // pred_check_branch
          %936 = sbr.rel (%p934) target = $region92
        $region91: #{tpu_custom_call.1} parent=83 // pred_region
          %s937 = sand.u32 %s227, 1
          %s938 = scalar_lea.sflag [#allocation17], %s937
          %s939 = sand.u32 %s227, 1
          %s940 = smul.addr %s939, 8
          %s941 = scalar_lea.vmem [#allocation16], %s940
          %942 = dma.done %s938, 128
        $region92: #{tpu_custom_call.1} parent=83 // pred_fallthru
          _
      $region84: #{tpu_custom_call.1} parent=5 // pred_fallthru
        _
    $region6: #{tpu_custom_call.1} parent=1 // loop_footer
      %s32 = sadd.s32 1, %s28
    $region7: #{tpu_custom_call.1} parent=1 // loop_footer_branch
      %27 = sbr.rel target = $region3
    $region8: #{tpu_custom_call.1} parent=1 // loop_exit
      _
    %943 = vsyncpa [#allocation5], 1
    %s944 = scalar_lea.sflag [#allocation5], 1
    %945 = vsyncpa %s944, 1
    %946 = vsyncpa [#allocation8], 1
    %s947 = scalar_lea.sflag [#allocation8], 1
    %948 = vsyncpa %s947, 1
    %949 = vsyncpa [#allocation11], 1
    %950 = vsyncpa [#allocation14], 1
    %951 = vsyncpa [#allocation6], 1
    %s952 = scalar_lea.sflag [#allocation6], 1
    %953 = vsyncpa %s952, 1
    %954 = vsyncpa [#allocation17], 1
    %s955 = scalar_lea.sflag [#allocation17], 1
    %956 = vsyncpa %s955, 1

</llo_original>
